<compile_context>
chip_gen: v7x
topology: tpu7x:2x2x1
jax: 0.10.0
libtpu: 0.0.40
codegen_flags: <defaults>
</compile_context>

<pallas_src>
import math
import functools

import jax
import jax.numpy as jnp
from jax.experimental import pallas as pl
from jax.experimental.pallas import tpu as pltpu


_LANE = 128            # lane width of a vreg
_SMALL_M_ROWS = 1024   # below this, keep the whole activation resident (tm = Mp)


def _round_up(v, m):
    return ((v + m - 1) // m) * m


@functools.lru_cache(maxsize=None)
def _vmem_capacity():
    """Physical VMEM bytes of the local TPU (fallback: v7x-sized 64 MiB)."""
    try:
        info = pltpu.get_tpu_info()
        cap = getattr(info, "vmem_capacity_bytes", None)
        if cap:
            return int(cap)
    except Exception:
        pass
    return 64 * 1024 * 1024


@functools.lru_cache(maxsize=None)
def _tile_plan(n, k, in_itemsize, out_itemsize, has_bias):
    """Pick (tn, tk) once per layer shape / dtype. tm is chosen per call.

    tn/tk are fixed per layer so the transposed weight can be padded once and
    cached. Sized against ~75% of physical VMEM with a worst-case tm so the
    same plan is safe on v5e/v6e (128 MiB) and v7x (64 MiB).
    """
    budget = int(0.75 * _vmem_capacity())
    tn = min(1024, _round_up(n, _LANE))                  # multiple of 128 (256 on big N)
    tk = min(4096 // in_itemsize, _round_up(k, _LANE))   # 1024 f32 / 2048 bf16
    tm_budget = _SMALL_M_ROWS                            # worst-case resident-M tile

    def needed(tn_, tk_):
        return (2 * tm_budget * tk_ * in_itemsize        # double-buffered x tiles
                + 2 * tk_ * tn_ * in_itemsize            # double-buffered W^T tiles
                + 2 * tm_budget * tn_ * out_itemsize     # double-buffered out tiles
                + tm_budget * tn_ * 4                    # f32 accumulator
                + (2 * tn_ * 4 if has_bias else 0))

    slack = 8 * 1024 * 1024
    while needed(tn, tk) > budget - slack and tk > _LANE and tk % (2 * _LANE) == 0:
        tk //= 2
    while needed(tn, tk) > budget - slack and tn > _LANE and tn % (2 * _LANE) == 0:
        tn //= 2
    return tn, tk


def _linear_bias_kernel(x_ref, wt_ref, b_ref, o_ref, acc_ref):
    # x_ref: (tm, tk), wt_ref: (tk, tn) pre-transposed weight, b_ref: (1, tn)
    # o_ref: (tm, tn), acc_ref: (tm, tn) f32 scratch resident across k.
    k = pl.program_id(2)

    @pl.when(k == 0)
    def _():
        # Fold bias into the accumulator init (added exactly once).
        acc_ref[...] = jnp.broadcast_to(
            b_ref[...].astype(jnp.float32), acc_ref.shape)

    acc_ref[...] += jnp.dot(
        x_ref[...], wt_ref[...], preferred_element_type=jnp.float32)

    @pl.when(k == pl.num_programs(2) - 1)
    def _():
        o_ref[...] = acc_ref[...].astype(o_ref.dtype)


def _linear_nobias_kernel(x_ref, wt_ref, o_ref, acc_ref):
    k = pl.program_id(2)

    @pl.when(k == 0)
    def _():
        acc_ref[...] = jnp.zeros_like(acc_ref)

    acc_ref[...] += jnp.dot(
        x_ref[...], wt_ref[...], preferred_element_type=jnp.float32)

    @pl.when(k == pl.num_programs(2) - 1)
    def _():
        o_ref[...] = acc_ref[...].astype(o_ref.dtype)


@functools.partial(jax.jit, static_argnames=("n", "tn", "tk", "has_bias"))
def _linear_padded(x, wt_pad, b_pad, *, n, tn, tk, has_bias):
    """x: (..., K); wt_pad: (Kp, Np) pre-transposed + pre-padded weight;
    b_pad: (1, Np) or None. Returns (..., n)."""
    out_dtype = x.dtype
    lead = x.shape[:-1]
    k = x.shape[-1]
    m = int(math.prod(lead)) if lead else 1
    x2d = x.reshape(m, k)

    kp, np_ = wt_pad.shape
    in_itemsize = jnp.dtype(x.dtype).itemsize
    w_itemsize = jnp.dtype(wt_pad.dtype).itemsize
    out_itemsize = jnp.dtype(out_dtype).itemsize
    sub = max(8, 32 // in_itemsize)  # native sublane rows: 8 f32 / 16 bf16 / 32 int8

    mp_min = _round_up(m, sub)
    if mp_min <= _SMALL_M_ROWS:
        # Decode / small-batch path: whole activation resident in VMEM, grid is
        # effectively (N, K) -> the weight streams from HBM exactly once.
        tm = mp_min
    else:
        # Balance M blocks around 512 rows to minimize padding waste.
        nblk = pl.cdiv(mp_min, 512)
        tm = _round_up(pl.cdiv(mp_min, nblk), sub)
    mp = _round_up(m, tm)

    # v7x has 2 TensorCores per chip: if the (M, N) grid collapsed to a single
    # block, split N (keeping >=128 lanes) so both cores get work. Harmless on
    # the single-TC v5e/v6e.
    while ((mp // tm) * (np_ // tn) < 2 and tn >= 2 * _LANE
           and (tn // 2) % _LANE == 0 and np_ % (tn // 2) == 0):
        tn //= 2

    if (mp, kp) != (m, k):
        x2d = jnp.pad(x2d, ((0, mp - m), (0, kp - k)))

    grid = (mp // tm, np_ // tn, kp // tk)

    vmem_needed = (2 * tm * tk * in_itemsize
                   + 2 * tk * tn * w_itemsize
                   + 2 * tm * tn * out_itemsize
                   + tm * tn * 4
                   + (2 * tn * 4 if has_bias else 0))
    vmem_cap = int(0.75 * _vmem_capacity())   # ~48 MiB v7x, ~96 MiB v5e/v6e
    vmem_limit = int(min(vmem_cap,
                         max(32 * 1024 * 1024,
                             vmem_needed + 16 * 1024 * 1024)))

    # Truthful tiled traffic: x re-read grid_N times, W re-read grid_M times.
    cost = pl.CostEstimate(
        flops=2 * m * n * k,
        transcendentals=0,
        bytes_accessed=int(mp * kp * grid[1] * in_itemsize
                           + kp * np_ * grid[0] * w_itemsize
                           + mp * np_ * out_itemsize
                           + (np_ * 4 if has_bias else 0)))

    in_specs = [
        pl.BlockSpec((tm, tk), lambda i, j, kk: (i, kk)),
        pl.BlockSpec((tk, tn), lambda i, j, kk: (kk, j)),
    ]
    operands = [x2d, wt_pad]
    if has_bias:
        in_specs.append(pl.BlockSpec((1, tn), lambda i, j, kk: (0, j)))
        operands.append(b_pad)
        kernel = _linear_bias_kernel
    else:
        kernel = _linear_nobias_kernel

    out2d = pl.pallas_call(
        kernel,
        out_shape=jax.ShapeDtypeStruct((mp, np_), out_dtype),
        grid_spec=pltpu.PrefetchScalarGridSpec(
            num_scalar_prefetch=0,
            grid=grid,
            in_specs=in_specs,
            out_specs=pl.BlockSpec((tm, tn), lambda i, j, kk: (i, j)),
            scratch_shapes=[pltpu.VMEM((tm, tn), jnp.float32)]),
        compiler_params=pltpu.CompilerParams(
            dimension_semantics=("parallel", "parallel", "arbitrary"),
            vmem_limit_bytes=vmem_limit),
        cost_estimate=cost,
    )(*operands)

    out2d = out2d[:m, :n]
    return out2d.reshape(*lead, n)


class PallasLinear:
    """Mirrors parlai Linear.__init__ parameter shapes & init distribution.

    The transposed/padded weight is precomputed once (cached) — call
    refresh_weight() if self.weight is mutated (e.g. a trained shared
    embedding); this inference-only kernel treats it as fixed otherwise.
    """

    def __init__(self, in_features, out_features, bias=True,
                 shared_weight=None, key=None):
        self.in_features = in_features
        self.out_features = out_features
        self.shared = shared_weight is not None
        if key is None:
            key = jax.random.PRNGKey(0)
        wkey, bkey = jax.random.split(key)
        stdv = 1.0 / math.sqrt(in_features)
        if not self.shared:
            self.weight = jax.random.uniform(
                wkey, (out_features, in_features),
                minval=-stdv, maxval=stdv, dtype=jnp.float32)
        else:
            if (shared_weight.shape[0] != out_features
                    or shared_weight.shape[1] != in_features):
                raise RuntimeError('wrong dimensions for shared weights')
            self.weight = shared_weight
        if bias:
            self.bias = jax.random.uniform(
                bkey, (out_features,),
                minval=-stdv, maxval=stdv, dtype=jnp.float32)
        else:
            self.bias = None
        self.refresh_weight()

    def refresh_weight(self):
        """Pre-transpose + pre-pad the weight ONCE so no K*N transpose/pad pass
        runs per forward call."""
        n, k = self.out_features, self.in_features
        w = self.weight
        if self.shared:
            # "detach" — forward-pass no-op in this inference-only kernel.
            w = jax.lax.stop_gradient(w)
        itemsize = jnp.dtype(w.dtype).itemsize
        tn, tk = _tile_plan(n, k, itemsize, itemsize, self.bias is not None)
        kp, np_ = _round_up(k, tk), _round_up(n, tn)
        wt = w.T
        if (kp, np_) != (k, n):
            wt = jnp.pad(wt, ((0, kp - k), (0, np_ - n)))
        self._tn, self._tk = tn, tk
        self._wt_pad = jax.device_put(wt)
        if self.bias is not None:
            b2d = self.bias.reshape(1, n)
            if np_ != n:
                b2d = jnp.pad(b2d, ((0, 0), (0, np_ - n)))
            self._b_pad = jax.device_put(b2d)
        else:
            self._b_pad = None

    def __call__(self, x):
        return _linear_padded(x, self._wt_pad, self._b_pad,
                              n=self.out_features,
                              tn=self._tn, tk=self._tk,
                              has_bias=self._b_pad is not None)


if __name__ == "__main__":
    key = jax.random.PRNGKey(0)
    k_in, k_mod, k_in2 = jax.random.split(key, 3)

    # Small shapes consistent with the module usage (batch, seq, features).
    batch, seq, in_features, out_features = 2, 8, 32, 64
    x = jax.random.normal(k_in, (batch, seq, in_features), dtype=jnp.float32)

    layer = PallasLinear(in_features, out_features, bias=True, key=k_mod)
    y = jax.block_until_ready(layer(x))
    y_ref = x @ layer.weight.T + layer.bias
    assert y.shape == (batch, seq, out_features)
    assert jnp.allclose(y, y_ref, atol=1e-5, rtol=1e-5)

    # Non-tile-aligned shapes + no bias (exercises padding path, the no-bias
    # kernel and the N-split rule).
    m2, k2, n2 = 13, 100, 200
    x2 = jax.random.normal(k_in2, (m2, k2), dtype=jnp.float32)
    layer2 = PallasLinear(k2, n2, bias=False, key=k_mod)
    y2 = jax.block_until_ready(layer2(x2))
    y2_ref = x2 @ layer2.weight.T
    assert y2.shape == (m2, n2)
    assert jnp.allclose(y2, y2_ref, atol=1e-4, rtol=1e-4)

    # Shared-weight path (weight "detached" in forward).
    layer3 = PallasLinear(in_features, out_features, bias=True,
                          shared_weight=layer.weight, key=k_mod)
    y3 = jax.block_until_ready(layer3(x))
    y3_ref = x @ layer.weight.T + layer3.bias
    assert jnp.allclose(y3, y3_ref, atol=1e-5, rtol=1e-5)

    print("KERNEL_OK")
</pallas_src>

<mosaic_0001>
module attributes {stable_mosaic.version = 11 : i64} {
  func.func @_linear_bias_kernel(%arg0: i32, %arg1: i32, %arg2: i32, %arg3: memref<16x128xf32, #tpu.memory_space<vmem>>, %arg4: memref<128x128xf32, #tpu.memory_space<vmem>>, %arg5: memref<1x128xf32, #tpu.memory_space<vmem>>, %arg6: memref<16x128xf32, #tpu.memory_space<vmem>>, %arg7: memref<16x128xf32, #tpu.memory_space<vmem>>) attributes {dimension_semantics = [#tpu.dimension_semantics<parallel>, #tpu.dimension_semantics<parallel>, #tpu.dimension_semantics<arbitrary>], iteration_bounds = array<i64: 1, 1, 1>, scalar_prefetch = 0 : i64, scratch_operands = 1 : i64, tpu.core_type = #tpu.core_type<tc>, window_params = [{transform_indices = @transform_0, window_bounds = array<i64: 16, 128>}, {transform_indices = @transform_1, window_bounds = array<i64: 128, 128>}, {transform_indices = @transform_2, window_bounds = array<i64: 1, 128>}, {transform_indices = @transform_3, window_bounds = array<i64: 16, 128>}]} {
    %c0_i32 = arith.constant 0 : i32
    %0 = arith.cmpi eq, %arg2, %c0_i32 : i32
    %1 = arith.extui %0 : i1 to i32
    %c0_i32_0 = arith.constant 0 : i32
    %2 = arith.cmpi ne, %1, %c0_i32_0 : i32
    scf.if %2 {
      %c0_10 = arith.constant 0 : index
      %c0_11 = arith.constant 0 : index
      %12 = vector.load %arg5[%c0_10, %c0_11] : memref<1x128xf32, #tpu.memory_space<vmem>>, vector<1x128xf32>
      %13 = vector.shape_cast %12 : vector<1x128xf32> to vector<1x128xf32>
      %14 = vector.broadcast %13 : vector<1x128xf32> to vector<16x128xf32>
      %c0_12 = arith.constant 0 : index
      %c0_13 = arith.constant 0 : index
      %15 = vector.load %arg7[%c0_12, %c0_13] : memref<16x128xf32, #tpu.memory_space<vmem>>, vector<16x128xf32>
      tpu.vector_store %arg7[%c0_12, %c0_13], %14 {strides = array<i32>} : memref<16x128xf32, #tpu.memory_space<vmem>>, vector<16x128xf32>,
    } else {
    }
    %c0 = arith.constant 0 : index
    %c0_1 = arith.constant 0 : index
    %3 = vector.load %arg7[%c0, %c0_1] : memref<16x128xf32, #tpu.memory_space<vmem>>, vector<16x128xf32>
    %c0_2 = arith.constant 0 : index
    %c0_3 = arith.constant 0 : index
    %4 = vector.load %arg3[%c0_2, %c0_3] : memref<16x128xf32, #tpu.memory_space<vmem>>, vector<16x128xf32>
    %c0_4 = arith.constant 0 : index
    %c0_5 = arith.constant 0 : index
    %5 = vector.load %arg4[%c0_4, %c0_5] : memref<128x128xf32, #tpu.memory_space<vmem>>, vector<128x128xf32>
    %cst = arith.constant dense<0.000000e+00> : vector<16x128xf32>
    %6 = tpu.matmul %4, %5, %cst {dimension_numbers = #tpu.dot_dimension_numbers<[1], [0], [0], [1], [0, 0, 1, 1], [], []>} : vector<16x128xf32>, vector<128x128xf32>, vector<16x128xf32> -> vector<16x128xf32>
    %7 = arith.addf %3, %6 : vector<16x128xf32>
    %c0_6 = arith.constant 0 : index
    %c0_7 = arith.constant 0 : index
    %8 = vector.load %arg7[%c0_6, %c0_7] : memref<16x128xf32, #tpu.memory_space<vmem>>, vector<16x128xf32>
    tpu.vector_store %arg7[%c0_6, %c0_7], %7 {strides = array<i32>} : memref<16x128xf32, #tpu.memory_space<vmem>>, vector<16x128xf32>,
    %c0_i32_8 = arith.constant 0 : i32
    %9 = arith.cmpi eq, %arg2, %c0_i32_8 : i32
    %10 = arith.extui %9 : i1 to i32
    %c0_i32_9 = arith.constant 0 : i32
    %11 = arith.cmpi ne, %10, %c0_i32_9 : i32
    scf.if %11 {
      %c0_10 = arith.constant 0 : index
      %c0_11 = arith.constant 0 : index
      %12 = vector.load %arg7[%c0_10, %c0_11] : memref<16x128xf32, #tpu.memory_space<vmem>>, vector<16x128xf32>
      %c0_12 = arith.constant 0 : index
      %c0_13 = arith.constant 0 : index
      %13 = vector.load %arg6[%c0_12, %c0_13] : memref<16x128xf32, #tpu.memory_space<vmem>>, vector<16x128xf32>
      tpu.vector_store %arg6[%c0_12, %c0_13], %12 {strides = array<i32>} : memref<16x128xf32, #tpu.memory_space<vmem>>, vector<16x128xf32>,
    } else {
    }
    return
  }
  func.func @transform_0(%arg0: i32, %arg1: i32, %arg2: i32) -> (i32, i32) {
    %c0_i32 = arith.constant 0 : i32
    return %arg0, %arg2 : i32, i32
  }
  func.func @transform_1(%arg0: i32, %arg1: i32, %arg2: i32) -> (i32, i32) {
    %c0_i32 = arith.constant 0 : i32
    return %arg2, %arg1 : i32, i32
  }
  func.func @transform_2(%arg0: i32, %arg1: i32, %arg2: i32) -> (i32, i32) {
    %c0_i32 = arith.constant 0 : i32
    %c0_i32_0 = arith.constant 0 : i32
    return %c0_i32, %arg1 : i32, i32
  }
  func.func @transform_3(%arg0: i32, %arg1: i32, %arg2: i32) -> (i32, i32) {
    %c0_i32 = arith.constant 0 : i32
    return %arg0, %arg1 : i32, i32
  }
}

</mosaic_0001>

<llo_original>
// kernel: _linear_padded.1
$region0: #{_linear_padded.1}
  #allocation0 [shape = 'u32[]', space=smem, size = 0x4, offset = 0x4, fixed_abs, tag = 'smem constant byte address 0x4 - core index']
  #allocation1 [shape = 'u32[144,128]{1,0:T(1,128)}', space=vmem, size = 0x12000, scoped, tag = 'internal scratch']
  #allocation2 [shape = 'f32[16,128]{1,0:T(8,128)}', space=vmem, size = 0x2000, scoped, tag = 'scratch operand']
  %s0 = inlined_call_operand.vmem [shape: f32[16,128], index: 0, kind: input, shape index: {}]
  %s1 = inlined_call_operand.hbm [shape: f32[128,128], index: 1, kind: input, shape index: {}]
  %s2 = inlined_call_operand.vmem [shape: f32[1,128], index: 2, kind: input, shape index: {}]
  %s3 = inlined_call_operand.vmem [shape: f32[16,128], index: 3, kind: output, shape index: {}]
  %s4 = sld [smem:[#allocation0]]
  $region34: #{_linear_padded.1} parent=0
    _
  %s6 = ssub.s32 1, %s4
  %s7 = scalar_select 0, %s6, %s4
  $region1: #{_linear_padded.1} parent=0
    #allocation3 [shape = 'u8[65536]{0}', space=vmem, size = 0x10000, scoped, tag = 'input window, operand 1, single buffered']
    #allocation4 [shape = 's32[1]{0}', space=sflag, size = 0x4, scoped, tag = 'scoped memory for _linear_padded.1']
    %8 = vsyncpa [#allocation4], 0
    // Predicated region
    $region2: #{_linear_padded.1} parent=1 // pred_check
      _
    $region3: #{_linear_padded.1} parent=1 // pred_check_branch
      %10 = sbr.rel (0) target = $region5
    $region4: #{_linear_padded.1} parent=1 // pred_region
      _
    $region5: #{_linear_padded.1} parent=1 // pred_fallthru
      _
    // Predicated region
    $region6: #{_linear_padded.1} parent=1 // pred_check
      _
    $region7: #{_linear_padded.1} parent=1 // pred_check_branch
      %12 = sbr.rel (0) target = $region9
    $region8: #{_linear_padded.1} parent=1 // pred_region
      %s14 = ssub.s32 2048, 2048
      %15 = vsyncadd [#allocation4], %s14
      %s16 = sshll.u32 [#allocation3], 4
      %s17 = int_to_ptr.vmem [resolvable:$true] %s16
      %22 = dma.hbm_to_vmem [thread:$0]  %s1, 2048, %s17, [#allocation4], 128, 128, 8
    $region9: #{_linear_padded.1} parent=1 // pred_fallthru
      _
    // Predicated region
    $region10: #{_linear_padded.1} parent=1 // pred_check
      _
    $region11: #{_linear_padded.1} parent=1 // pred_check_branch
      %24 = sbr.rel (0) target = $region13
    $region12: #{_linear_padded.1} parent=1 // pred_region
      _
    $region13: #{_linear_padded.1} parent=1 // pred_fallthru
      _
    // Predicated region
    $region14: #{_linear_padded.1} parent=1 // pred_check
      _
    $region15: #{_linear_padded.1} parent=1 // pred_check_branch
      %26 = sbr.rel (0) target = $region17
    $region16: #{_linear_padded.1} parent=1 // pred_region
      %27 = dma.done [#allocation4], 2048
    $region17: #{_linear_padded.1} parent=1 // pred_fallthru
      _
    %p28 = scmp.eq.s32.totalorder 0, 0
    // Predicated region
    $region18: #{_linear_padded.1} parent=1 // pred_check
      %p29 = pneg %p28
    $region19: #{_linear_padded.1} parent=1 // pred_check_branch
      %31 = sbr.rel (%p29) target = $region21
    $region20: #{_linear_padded.1} parent=1 // pred_region
      %v32 = vld [vmem:[%s2] sm:$0x1]
      %v34 = vlaneseq
      %v35 = vshrl.u32 %v34, 7
      %v36 = vsub.s32 0, %v35
      %v37 = vrot.slane %v32, %v36
      %39 = vst [vmem:[#allocation2] sm:$0xff] %v37
      %40 = vst [vmem:[#allocation2 + $0x8] sm:$0xff] %v37
    $region21: #{_linear_padded.1} parent=1 // pred_fallthru
      _
    %v41 = vld [vmem:[#allocation2] sm:$0xff]
    %v42 = vld [vmem:[#allocation2 + $0x8] sm:$0xff]
    %v43 = vld [vmem:[%s0] sm:$0xff]
    %v44 = vld [vmem:[%s0 + $0x8] sm:$0xff]
    %v45 = vld [vmem:[#allocation3] sm:$0xff]
    %v46 = vld [vmem:[#allocation3 + $0x8] sm:$0xff]
    %v47 = vld [vmem:[#allocation3 + $0x10] sm:$0xff]
    %v48 = vld [vmem:[#allocation3 + $0x18] sm:$0xff]
    %v49 = vld [vmem:[#allocation3 + $0x20] sm:$0xff]
    %v50 = vld [vmem:[#allocation3 + $0x28] sm:$0xff]
    %v51 = vld [vmem:[#allocation3 + $0x30] sm:$0xff]
    %v52 = vld [vmem:[#allocation3 + $0x38] sm:$0xff]
    %v53 = vld [vmem:[#allocation3 + $0x40] sm:$0xff]
    %v54 = vld [vmem:[#allocation3 + $0x48] sm:$0xff]
    %v55 = vld [vmem:[#allocation3 + $0x50] sm:$0xff]
    %v56 = vld [vmem:[#allocation3 + $0x58] sm:$0xff]
    %v57 = vld [vmem:[#allocation3 + $0x60] sm:$0xff]
    %v58 = vld [vmem:[#allocation3 + $0x68] sm:$0xff]
    %v59 = vld [vmem:[#allocation3 + $0x70] sm:$0xff]
    %v60 = vld [vmem:[#allocation3 + $0x78] sm:$0xff]
    %61 = vmatprep.subr.mxu0 0.0
    %62 = vmatpush1.msra.mxu0 %v45
    %63 = vmatprep.subr.mxu0 0.0
    %64 = vmatpush1.msra.mxu0 %v46
    %65 = vmatprep.subr.mxu0 0.0
    %66 = vmatpush1.msra.mxu0 %v47
    %67 = vmatprep.subr.mxu0 0.0
    %68 = vmatpush1.msra.mxu0 %v48
    %69 = vmatprep.subr.mxu0 0.0
    %70 = vmatpush1.msra.mxu0 %v49
    %71 = vmatprep.subr.mxu0 0.0
    %72 = vmatpush1.msra.mxu0 %v50
    %73 = vmatprep.subr.mxu0 0.0
    %74 = vmatpush1.msra.mxu0 %v51
    %75 = vmatprep.subr.mxu0 0.0
    %76 = vmatpush1.msra.mxu0 %v52
    %77 = vmatprep.subr.mxu0 0.0
    %78 = vmatpush1.msra.mxu0 %v53
    %79 = vmatprep.subr.mxu0 0.0
    %80 = vmatpush1.msra.mxu0 %v54
    %81 = vmatprep.subr.mxu0 0.0
    %82 = vmatpush1.msra.mxu0 %v55
    %83 = vmatprep.subr.mxu0 0.0
    %84 = vmatpush1.msra.mxu0 %v56
    %85 = vmatprep.subr.mxu0 0.0
    %86 = vmatpush1.msra.mxu0 %v57
    %87 = vmatprep.subr.mxu0 0.0
    %88 = vmatpush1.msra.mxu0 %v58
    %89 = vmatprep.subr.mxu0 0.0
    %90 = vmatpush1.msra.mxu0 %v59
    %91 = vmatprep.subr.mxu0 0.0
    %92 = vmatpush1.msra.mxu0 %v60
    %93 = vmatprep.subr.mxu0 0.0
    %94 = vmatpush1.msra.mxu0 0.0
    %95 = vmatprep.subr.mxu0 0.0
    %96 = vmatpush1.msra.mxu0 0.0
    %97 = vmatprep.subr.mxu0 0.0
    %98 = vmatpush1.msra.mxu0 0.0
    %99 = vmatprep.subr.mxu0 0.0
    %100 = vmatpush1.msra.mxu0 0.0
    %101 = vmatprep.subr.mxu0 0.0
    %102 = vmatpush1.msra.mxu0 0.0
    %103 = vmatprep.subr.mxu0 0.0
    %104 = vmatpush1.msra.mxu0 0.0
    %105 = vmatprep.subr.mxu0 0.0
    %106 = vmatpush1.msra.mxu0 0.0
    %107 = vmatprep.subr.mxu0 0.0
    %108 = vmatpush1.msra.mxu0 0.0
    %109 = vmatprep.subr.mxu0 0.0
    %110 = vmatpush1.msra.mxu0 0.0
    %111 = vmatprep.subr.mxu0 0.0
    %112 = vmatpush1.msra.mxu0 0.0
    %113 = vmatprep.subr.mxu0 0.0
    %114 = vmatpush1.msra.mxu0 0.0
    %115 = vmatprep.subr.mxu0 0.0
    %116 = vmatpush1.msra.mxu0 0.0
    %117 = vmatprep.subr.mxu0 0.0
    %118 = vmatpush1.msra.mxu0 0.0
    %119 = vmatprep.subr.mxu0 0.0
    %120 = vmatpush1.msra.mxu0 0.0
    %121 = vmatprep.subr.mxu0 0.0
    %122 = vmatpush1.msra.mxu0 0.0
    %123 = vmatprep.subr.mxu0 0.0
    %124 = vmatpush1.msra.mxu0 0.0
    %125 = vmatprep.mubr.f32.mxu0 0.0
    %126 = vmatmul.mubr.f32.gmra.mrb[0].mxu0 %v43
    %v127 = vpop.f32.mrb[0].mxu0
    %v128 = vadd.f32 0.0, %v127
    %v129 = vpop.f32.mrb[0].mxu0
    %130 = vmatprep.mubr.f32.mxu0 0.0
    %131 = vmatmul.mubr.f32.gmra.mrb[0].mxu0 %v44
    %v132 = vpop.f32.mrb[0].mxu0
    %v133 = vadd.f32 0.0, %v132
    %v134 = vpop.f32.mrb[0].mxu0
    %135 = vdwg.mxu0
    %v136 = vadd.f32 %v41, %v128
    %v137 = vadd.f32 %v42, %v133
    %138 = vst [vmem:[#allocation2] sm:$0xff] %v136
    %139 = vst [vmem:[#allocation2 + $0x8] sm:$0xff] %v137
    // Predicated region
    $region22: #{_linear_padded.1} parent=1 // pred_check
      %p140 = pneg %p28
    $region23: #{_linear_padded.1} parent=1 // pred_check_branch
      %142 = sbr.rel (%p140) target = $region25
    $region24: #{_linear_padded.1} parent=1 // pred_region
      %v143 = vld [vmem:[#allocation2] sm:$0xff]
      %v144 = vld [vmem:[#allocation2 + $0x8] sm:$0xff]
      %145 = vst [vmem:[%s3] sm:$0xff] %v143
      %146 = vst [vmem:[%s3 + $0x8] sm:$0xff] %v144
    $region25: #{_linear_padded.1} parent=1 // pred_fallthru
      _
    // Predicated region
    $region26: #{_linear_padded.1} parent=1 // pred_check
      _
    $region27: #{_linear_padded.1} parent=1 // pred_check_branch
      %148 = sbr.rel (0) target = $region29
    $region28: #{_linear_padded.1} parent=1 // pred_region
      _
    $region29: #{_linear_padded.1} parent=1 // pred_fallthru
      _
    // Predicated region
    $region30: #{_linear_padded.1} parent=1 // pred_check
      _
    $region31: #{_linear_padded.1} parent=1 // pred_check_branch
      %150 = sbr.rel (0) target = $region33
    $region32: #{_linear_padded.1} parent=1 // pred_region
      _
    $region33: #{_linear_padded.1} parent=1 // pred_fallthru
      _
    %151 = vsyncpa [#allocation4], 1

</llo_original>
